<compile_context>
chip_gen: v7x
topology: tpu7x:2x2x1
jax: 0.10.0
libtpu: 0.0.40
codegen_flags: <defaults>
</compile_context>

<pallas_src>
import jax
import jax.numpy as jnp
from jax.experimental import pallas as pl
from jax.experimental.pallas import tpu as pltpu

_LANE = 128


def _sigmoid_kernel(x_ref, o_ref):
    # Compute in f32 (no-op for f32 input; required for bf16 on v5e, which has
    # no bf16 VPU/EUP).  sigmoid(x) = 0.5 * tanh(0.5*x) + 0.5: one EUP op plus
    # two cheap VPU ops — the kernel remains purely memory-bound.
    x = x_ref[...].astype(jnp.float32)
    o_ref[...] = (0.5 * jnp.tanh(0.5 * x) + 0.5).astype(o_ref.dtype)


def sigmoid_pallas(x: jax.Array) -> jax.Array:
    """Elementwise sigmoid via a Pallas TPU kernel. Any shape, float dtype."""
    orig_shape = x.shape
    orig_dtype = x.dtype
    n = x.size
    if n == 0:
        return x

    itemsize = jnp.dtype(orig_dtype).itemsize
    # Sub-32-bit dtypes pack along sublanes: min second-minor block tile is
    # 8 (f32), 16 (bf16/f16), 32 (int8/fp8).
    min_sub = {4: 8, 2: 16, 1: 32}.get(itemsize, 8)

    x_flat = jnp.ravel(x)
    tail_pad = (-n) % _LANE
    if tail_pad:
        # Only the sub-128-element tail is padded (at most 127 elements).
        x_flat = jnp.pad(x_flat, (0, tail_pad))
    total = n + tail_pad

    # Lane-dense width: widest of {1024, 512, 256, 128} dividing `total`
    # (fewer DMA descriptors, wide unmasked stores).
    width = _LANE
    for cand in (1024, 512, 256):
        if total % cand == 0:
            width = cand
            break
    rows = total // width
    x2d = x_flat.reshape(rows, width)

    # ~2 MiB blocks: ~85%+ of HBM roofline, and double-buffered in+out
    # (4 blocks ~ 8 MiB) fits v5e's 16 MiB scoped-VMEM default with headroom
    # on v6e/v7x.
    target_block_bytes = 2 * 1024 * 1024
    rows_per_block = max(min_sub, target_block_bytes // (width * itemsize))
    rows_per_block = (rows_per_block // min_sub) * min_sub

    # Prefer at least 2 grid steps so the "parallel" axis can shard across the
    # two TensorCores on v7x (only when the slab is big enough to split).
    if rows > 2 * min_sub:
        half = -(-rows // 2)                      # ceil(rows / 2)
        half = -(-half // min_sub) * min_sub      # round up to min_sub multiple
        rows_per_block = min(rows_per_block, half)

    tile_rows = min(rows_per_block, rows)         # == full extent if rows small
    grid = (pl.cdiv(rows, tile_rows),)            # ragged last block is masked

    out2d = pl.pallas_call(
        _sigmoid_kernel,
        out_shape=jax.ShapeDtypeStruct((rows, width), orig_dtype),
        grid_spec=pltpu.PrefetchScalarGridSpec(
            num_scalar_prefetch=0,
            grid=grid,
            in_specs=[pl.BlockSpec((tile_rows, width), lambda i: (i, 0))],
            out_specs=pl.BlockSpec((tile_rows, width), lambda i: (i, 0)),
        ),
        compiler_params=pltpu.CompilerParams(
            dimension_semantics=("parallel",)),
    )(x2d)

    out_flat = out2d.reshape(-1)
    if tail_pad:
        out_flat = out_flat[:n]
    return out_flat.reshape(orig_shape)


if __name__ == "__main__":
    key = jax.random.PRNGKey(0)
    x = jax.random.normal(key, (2, 4, 16, 16), dtype=jnp.float32)  # NCHW

    y = sigmoid_pallas(x)
    jax.block_until_ready(y)

    # Correctness check against plain JAX reference.
    y_ref = jax.nn.sigmoid(x)
    assert y.shape == x.shape and y.dtype == x.dtype
    assert jnp.allclose(y, y_ref, atol=1e-5, rtol=1e-5), (
        float(jnp.max(jnp.abs(y - y_ref))))
    print("KERNEL_OK")
</pallas_src>

<mosaic_0001>
module attributes {stable_mosaic.version = 11 : i64} {
  func.func @_sigmoid_kernel(%arg0: i32, %arg1: memref<2x1024xf32, #tpu.memory_space<vmem>>, %arg2: memref<2x1024xf32, #tpu.memory_space<vmem>>) attributes {dimension_semantics = [#tpu.dimension_semantics<parallel>], iteration_bounds = array<i64: 1>, scalar_prefetch = 0 : i64, scratch_operands = 0 : i64, tpu.core_type = #tpu.core_type<tc>, window_params = [{transform_indices = @transform_0, window_bounds = array<i64: 2, 1024>}, {transform_indices = @transform_1, window_bounds = array<i64: 2, 1024>}]} {
    %c0 = arith.constant 0 : index
    %c0_0 = arith.constant 0 : index
    %0 = vector.load %arg1[%c0, %c0_0] : memref<2x1024xf32, #tpu.memory_space<vmem>>, vector<2x1024xf32>
    %cst = arith.constant 5.000000e-01 : f32
    %1 = vector.broadcast %cst : f32 to vector<2x1024xf32>
    %2 = arith.mulf %1, %0 : vector<2x1024xf32>
    %3 = math.tanh %2 : vector<2x1024xf32>
    %cst_1 = arith.constant 5.000000e-01 : f32
    %4 = vector.broadcast %cst_1 : f32 to vector<2x1024xf32>
    %5 = arith.mulf %4, %3 : vector<2x1024xf32>
    %cst_2 = arith.constant 5.000000e-01 : f32
    %6 = vector.broadcast %cst_2 : f32 to vector<2x1024xf32>
    %7 = arith.addf %5, %6 : vector<2x1024xf32>
    %c0_3 = arith.constant 0 : index
    %c0_4 = arith.constant 0 : index
    %8 = vector.load %arg2[%c0_3, %c0_4] : memref<2x1024xf32, #tpu.memory_space<vmem>>, vector<2x1024xf32>
    tpu.vector_store %arg2[%c0_3, %c0_4], %7 {strides = array<i32>} : memref<2x1024xf32, #tpu.memory_space<vmem>>, vector<2x1024xf32>,
    return
  }
  func.func @transform_0(%arg0: i32) -> (i32, i32) {
    %c0_i32 = arith.constant 0 : i32
    %c0_i32_0 = arith.constant 0 : i32
    return %arg0, %c0_i32 : i32, i32
  }
  func.func @transform_1(%arg0: i32) -> (i32, i32) {
    %c0_i32 = arith.constant 0 : i32
    %c0_i32_0 = arith.constant 0 : i32
    return %arg0, %c0_i32 : i32, i32
  }
}

</mosaic_0001>

<llo_original>
// kernel: tpu_custom_call.1
$region0: #{tpu_custom_call.1}
  #allocation0 [shape = 'u32[]', space=smem, size = 0x4, offset = 0x4, fixed_abs, tag = 'smem constant byte address 0x4 - core index']
  #allocation1 [shape = 'u32[144,128]{1,0:T(1,128)}', space=vmem, size = 0x12000, scoped, tag = 'internal scratch']
  %s0 = inlined_call_operand.hbm [shape: f32[2,1024], index: 0, kind: input, shape index: {}]
  %s1 = inlined_call_operand.hbm [shape: f32[2,1024], index: 1, kind: output, shape index: {}]
  %s2 = sld [smem:[#allocation0]]
  $region18: #{tpu_custom_call.1} parent=0
    _
  %s4 = ssub.s32 1, %s2
  %s5 = scalar_select 0, %s4, %s2
  $region1: #{tpu_custom_call.1} parent=0
    #allocation2 [shape = 'u8[8192]{0}', space=vmem, size = 0x2000, scoped, tag = 'input window, operand 0, single buffered']
    #allocation3 [shape = 's32[1]{0}', space=sflag, size = 0x4, scoped, tag = 'scoped memory for tpu_custom_call.1']
    #allocation4 [shape = 's32[1]{0}', space=sflag, size = 0x4, scoped, tag = 'scoped memory for tpu_custom_call.1']
    #allocation5 [shape = 'u8[8192]{0}', space=vmem, size = 0x2000, scoped, tag = 'output window, operand 0, single buffered']
    %6 = vsyncpa [#allocation3], 0
    %7 = vsyncpa [#allocation4], 0
    // Predicated region
    $region2: #{tpu_custom_call.1} parent=1 // pred_check
      _
    $region3: #{tpu_custom_call.1} parent=1 // pred_check_branch
      %9 = sbr.rel (0) target = $region5
    $region4: #{tpu_custom_call.1} parent=1 // pred_region
      %s11 = ssub.s32 256, 256
      %12 = vsyncadd [#allocation3], %s11
      %s14 = sshll.u32 [#allocation2], 4
      %s15 = int_to_ptr.vmem [resolvable:$true] %s14
      %17 = dma.hbm_to_vmem [thread:$0]  %s0, 256, %s15, [#allocation3]
    $region5: #{tpu_custom_call.1} parent=1 // pred_fallthru
      _
    // Predicated region
    $region6: #{tpu_custom_call.1} parent=1 // pred_check
      _
    $region7: #{tpu_custom_call.1} parent=1 // pred_check_branch
      %19 = sbr.rel (0) target = $region9
    $region8: #{tpu_custom_call.1} parent=1 // pred_region
      %20 = dma.done [#allocation3], 256
    $region9: #{tpu_custom_call.1} parent=1 // pred_fallthru
      _
    %v21 = vld [vmem:[#allocation2] sm:$0xff]
    %v22 = vld [vmem:[#allocation2 + $0x8] sm:$0xff]
    %v23 = vmul.f32 %v21, 0.5
    %v24 = vmul.f32 %v22, 0.5
    %v25 = vtanh.pop %v23
    %v26 = vtanh.pop %v24
    %v27 = vmul.f32 %v25, 0.5
    %v28 = vmul.f32 %v26, 0.5
    %v29 = vadd.f32 %v27, 0.5
    %v30 = vadd.f32 %v28, 0.5
    %31 = vst [vmem:[#allocation5] sm:$0xff] %v29
    %32 = vst [vmem:[#allocation5 + $0x8] sm:$0xff] %v30
    // Predicated region
    $region10: #{tpu_custom_call.1} parent=1 // pred_check
      _
    $region11: #{tpu_custom_call.1} parent=1 // pred_check_branch
      %34 = sbr.rel (0) target = $region13
    $region12: #{tpu_custom_call.1} parent=1 // pred_region
      %s36 = ssub.s32 256, 256
      %37 = vsyncadd [#allocation4], %s36
      %s39 = sshll.u32 [#allocation5], 4
      %s40 = int_to_ptr.vmem [resolvable:$true] %s39
      %42 = dma.vmem_to_hbm [thread:$0]  %s40, 256, %s1, [#allocation4]
    $region13: #{tpu_custom_call.1} parent=1 // pred_fallthru
      _
    // Predicated region
    $region14: #{tpu_custom_call.1} parent=1 // pred_check
      _
    $region15: #{tpu_custom_call.1} parent=1 // pred_check_branch
      %44 = sbr.rel (0) target = $region17
    $region16: #{tpu_custom_call.1} parent=1 // pred_region
      %45 = dma.done [#allocation4], 256
    $region17: #{tpu_custom_call.1} parent=1 // pred_fallthru
      _
    %46 = vsyncpa [#allocation3], 1
    %47 = vsyncpa [#allocation4], 1

</llo_original>
